<compile_context>
chip_gen: v5e
topology: v5e:2x2
jax: 0.10.0
libtpu: 0.0.40
codegen_flags: <defaults>
</compile_context>

<pallas_src>
import jax
import jax.numpy as jnp
from jax.experimental import pallas as pl
from jax.experimental.pallas import tpu as pltpu

_LN2 = 0.6931471805599453   # python float -> inlined literal, never captured
_BIG = 1e18                 # above this, x*x approaches f32 overflow


def _asinh_kernel(x_ref, o_ref):
    # Upcast inside the kernel (no-op for f32 inputs; free for bf16 inputs).
    x = x_ref[...].astype(jnp.float32)
    ax = jnp.abs(x)

    # Stable small/moderate-range formula (log1p-based, accurate near zero).
    # Clamp the squared term so the unselected lanes of the `where` below
    # never produce inf/NaN garbage from ax*ax overflow.
    ts = jnp.minimum(ax, _BIG)
    t2 = ts * ts
    small = jnp.log1p(ts + t2 / (1.0 + jnp.sqrt(t2 + 1.0)))

    # Huge-range formula: asinh(ax) ~= log(2*ax) = log(ax) + ln2.
    # (Relative error ~1/(4*ax^2) < 1e-36 at the 1e18 threshold.)
    large = jnp.log(ax) + _LN2

    y = jnp.where(ax > _BIG, large, small)

    # Restore the sign of x by copying its sign bit (y >= 0 here): a couple of
    # cheap VPU bit ops instead of a compare/select/multiply chain, and it
    # maps -0.0 -> -0.0.  Shift amounts are python ints, so nothing is closed
    # over as a kernel constant.
    xb = pltpu.bitcast(x, jnp.uint32)
    sign_bit = (xb >> 31) << 31
    y_signed = pltpu.bitcast(pltpu.bitcast(y, jnp.uint32) | sign_bit, jnp.float32)

    o_ref[...] = y_signed.astype(o_ref.dtype)


def asinh_pallas(x):
    """Elementwise asinh via a Pallas TPU kernel. Any shape, f32/bf16 dtype."""
    orig_shape = x.shape
    dtype = x.dtype
    n = int(x.size)

    lane, sub = 128, 8

    if n % lane == 0 and (n // lane) % sub == 0:
        # Fast path (covers the reference 2*4*16*16 = 16*128 shape): pure
        # reshape, no pad / slice / cast round-trips through HBM.
        rows = n // lane
        x2d = x.reshape(rows, lane)
        padded = False
    else:
        # Ragged tail: pad only when genuinely needed.
        rows = -(-n // lane)
        rows = -(-rows // sub) * sub
        x2d = jnp.pad(x.reshape(-1), (0, rows * lane - n)).reshape(rows, lane)
        padded = True

    # ~1 MiB (f32) blocks: double-buffered in+out stays far below the scoped
    # VMEM limit on v5e/v6e and v7x's smaller 64 MiB physical VMEM, while big
    # enough (>=512 rows for large inputs) to sit near the HBM roofline.
    row_tile = min(rows, 2048)
    grid = (pl.cdiv(rows, row_tile),)  # ragged last block handled by Pallas

    out2d = pl.pallas_call(
        _asinh_kernel,
        out_shape=jax.ShapeDtypeStruct((rows, lane), dtype),
        grid=grid,
        in_specs=[pl.BlockSpec((row_tile, lane), lambda i: (i, 0))],
        out_specs=pl.BlockSpec((row_tile, lane), lambda i: (i, 0)),
        compiler_params=pltpu.CompilerParams(
            # Independent row tiles -> shard across both v7x TensorCores.
            dimension_semantics=("parallel",),
        ),
    )(x2d)

    if padded:
        return out2d.reshape(-1)[:n].reshape(orig_shape)
    return out2d.reshape(orig_shape)


if __name__ == "__main__":
    key = jax.random.PRNGKey(0)
    # NCHW input matching the PyTorch module's usage.
    x = jax.random.normal(key, (2, 4, 16, 16), dtype=jnp.float32) * 3.0

    y = asinh_pallas(x)
    jax.block_until_ready(y)

    # Sanity-check against the JAX reference.
    y_ref = jnp.arcsinh(x)
    assert y.shape == x.shape and y.dtype == x.dtype
    assert jnp.max(jnp.abs(y - y_ref)) < 1e-5

    print("KERNEL_OK")
</pallas_src>

<mosaic_0001>
module attributes {stable_mosaic.version = 11 : i64} {
  func.func @_asinh_kernel(%arg0: i32, %arg1: memref<16x128xf32, #tpu.memory_space<vmem>>, %arg2: memref<16x128xf32, #tpu.memory_space<vmem>>) attributes {dimension_semantics = [#tpu.dimension_semantics<parallel>], iteration_bounds = array<i64: 1>, scalar_prefetch = 0 : i64, scratch_operands = 0 : i64, tpu.core_type = #tpu.core_type<tc>, window_params = [{transform_indices = @transform_0, window_bounds = array<i64: 16, 128>}, {transform_indices = @transform_1, window_bounds = array<i64: 16, 128>}]} {
    %c0 = arith.constant 0 : index
    %c0_0 = arith.constant 0 : index
    %0 = vector.load %arg1[%c0, %c0_0] : memref<16x128xf32, #tpu.memory_space<vmem>>, vector<16x128xf32>
    %1 = math.absf %0 : vector<16x128xf32>
    %cst = arith.constant 9.99999984E+17 : f32
    %2 = vector.broadcast %cst : f32 to vector<16x128xf32>
    %3 = arith.minimumf %1, %2 : vector<16x128xf32>
    %4 = arith.mulf %3, %3 : vector<16x128xf32>
    %cst_1 = arith.constant 1.000000e+00 : f32
    %5 = vector.broadcast %cst_1 : f32 to vector<16x128xf32>
    %6 = arith.addf %4, %5 : vector<16x128xf32>
    %7 = math.sqrt %6 : vector<16x128xf32>
    %cst_2 = arith.constant 1.000000e+00 : f32
    %8 = vector.broadcast %cst_2 : f32 to vector<16x128xf32>
    %9 = arith.addf %8, %7 : vector<16x128xf32>
    %10 = arith.divf %4, %9 : vector<16x128xf32>
    %11 = arith.addf %3, %10 : vector<16x128xf32>
    %12 = math.log1p %11 : vector<16x128xf32>
    %13 = math.log %1 : vector<16x128xf32>
    %cst_3 = arith.constant 0.693147182 : f32
    %14 = vector.broadcast %cst_3 : f32 to vector<16x128xf32>
    %15 = arith.addf %13, %14 : vector<16x128xf32>
    %cst_4 = arith.constant 9.99999984E+17 : f32
    %16 = vector.broadcast %cst_4 : f32 to vector<16x128xf32>
    %17 = arith.cmpf ogt, %1, %16 : vector<16x128xf32>
    %18 = arith.select %17, %15, %12 : vector<16x128xi1>, vector<16x128xf32>
    %19 = tpu.bitcast %0 : vector<16x128xf32> -> vector<16x128xi32>
    %c31_i32 = arith.constant 31 : i32
    %20 = vector.broadcast %c31_i32 : i32 to vector<16x128xi32>
    %21 = arith.shrui %19, %20 : vector<16x128xi32>
    %c31_i32_5 = arith.constant 31 : i32
    %22 = vector.broadcast %c31_i32_5 : i32 to vector<16x128xi32>
    %23 = arith.shli %21, %22 : vector<16x128xi32>
    %24 = tpu.bitcast %18 : vector<16x128xf32> -> vector<16x128xi32>
    %25 = arith.ori %24, %23 : vector<16x128xi32>
    %26 = tpu.bitcast %25 : vector<16x128xi32> -> vector<16x128xf32>
    %c0_6 = arith.constant 0 : index
    %c0_7 = arith.constant 0 : index
    %27 = vector.load %arg2[%c0_6, %c0_7] : memref<16x128xf32, #tpu.memory_space<vmem>>, vector<16x128xf32>
    tpu.vector_store %arg2[%c0_6, %c0_7], %26 {strides = array<i32>} : memref<16x128xf32, #tpu.memory_space<vmem>>, vector<16x128xf32>,
    return
  }
  func.func @transform_0(%arg0: i32) -> (i32, i32) {
    %c0_i32 = arith.constant 0 : i32
    %c0_i32_0 = arith.constant 0 : i32
    return %arg0, %c0_i32 : i32, i32
  }
  func.func @transform_1(%arg0: i32) -> (i32, i32) {
    %c0_i32 = arith.constant 0 : i32
    %c0_i32_0 = arith.constant 0 : i32
    return %arg0, %c0_i32 : i32, i32
  }
}

</mosaic_0001>

<llo_original>
// kernel: tpu_custom_call.1
$region0: #{tpu_custom_call.1}
  #allocation0 [shape = 'u32[]', space=smem, size = 0x4, offset = 0x4, fixed_abs, tag = 'smem constant byte address 0x4 - core index']
  #allocation1 [shape = 'u32[72,128]{1,0:T(1,128)}', space=vmem, size = 0x9000, scoped, tag = 'internal scratch']
  %s0 = inlined_call_operand.hbm [shape: f32[16,128], index: 0, kind: input, shape index: {}]
  %s1 = inlined_call_operand.hbm [shape: f32[16,128], index: 1, kind: output, shape index: {}]
  %s2 = sld [smem:[#allocation0]]
  $region18: #{tpu_custom_call.1} parent=0
    _
  %s4 = ssub.s32 1, %s2
  %s5 = scalar_select 0, %s4, %s2
  $region1: #{tpu_custom_call.1} parent=0
    #allocation2 [shape = 'u8[8192]{0}', space=vmem, size = 0x2000, scoped, tag = 'input window, operand 0, single buffered']
    #allocation3 [shape = 's32[1]{0}', space=sflag, size = 0x4, scoped, tag = 'scoped memory for tpu_custom_call.1']
    #allocation4 [shape = 's32[1]{0}', space=sflag, size = 0x4, scoped, tag = 'scoped memory for tpu_custom_call.1']
    #allocation5 [shape = 'u8[8192]{0}', space=vmem, size = 0x2000, scoped, tag = 'output window, operand 0, single buffered']
    %6 = vsyncpa [#allocation3], 0
    %7 = vsyncpa [#allocation4], 0
    // Predicated region
    $region2: #{tpu_custom_call.1} parent=1 // pred_check
      _
    $region3: #{tpu_custom_call.1} parent=1 // pred_check_branch
      %9 = sbr.rel (0) target = $region5
    $region4: #{tpu_custom_call.1} parent=1 // pred_region
      %11 = vsyncadd [#allocation3], 0
      %s12 = sshll.u32 %s0, 4
      %s13 = int_to_ptr.hbm [resolvable:$true] %s12
      %s14 = sshll.u32 [#allocation2], 4
      %s15 = int_to_ptr.vmem [resolvable:$true] %s14
      %20 = dma.hbm_to_vmem [thread:$0]  %s13, 256, %s15, [#allocation3], 128, 128, 8
    $region5: #{tpu_custom_call.1} parent=1 // pred_fallthru
      _
    // Predicated region
    $region6: #{tpu_custom_call.1} parent=1 // pred_check
      _
    $region7: #{tpu_custom_call.1} parent=1 // pred_check_branch
      %22 = sbr.rel (0) target = $region9
    $region8: #{tpu_custom_call.1} parent=1 // pred_region
      %24 = dma.done [#allocation3], 256
    $region9: #{tpu_custom_call.1} parent=1 // pred_fallthru
      _
    %v25 = vld [vmem:[#allocation2] sm:$0xff]
    %v26 = vld [vmem:[#allocation2 + $0x8] sm:$0xff]
    %v27 = vand.u32 2147483647, %v25
    %v28 = vand.u32 2147483647, %v26
    %v29 = vmin.f32 %v27, 1e+18
    %v30 = vmin.f32 %v28, 1e+18
    %v31 = vmul.f32 %v29, %v29
    %v32 = vmul.f32 %v30, %v30
    %v33 = vadd.f32 %v31, 1.0
    %v34 = vadd.f32 %v32, 1.0
    %v35 = vrsqrt.pop %v33
    %v36 = vmul.f32 %v35, %v33
    %v37 = vmul.f32 %v36, %v35
    %v38 = vmul.f32 0.5, %v37
    %v39 = vsub.f32 1.5, %v38
    %v40 = vmul.f32 %v35, %v39
    %v41 = vmul.f32 %v33, %v40
    %vm42 = vcmp.eq.f32.partialorder %v33, inf
    %v43 = vsel %vm42, %v33, %v41
    %vm44 = vcmp.eq.f32.partialorder %v33, 0.0
    %v45 = vand.u32 %v33, 2147483648
    %v46 = vsel %vm44, %v45, %v43
    %v47 = vrsqrt.pop %v34
    %v48 = vmul.f32 %v47, %v34
    %v49 = vmul.f32 %v48, %v47
    %v50 = vmul.f32 0.5, %v49
    %v51 = vsub.f32 1.5, %v50
    %v52 = vmul.f32 %v47, %v51
    %v53 = vmul.f32 %v34, %v52
    %vm54 = vcmp.eq.f32.partialorder %v34, inf
    %v55 = vsel %vm54, %v34, %v53
    %vm56 = vcmp.eq.f32.partialorder %v34, 0.0
    %v57 = vand.u32 %v34, 2147483648
    %v58 = vsel %vm56, %v57, %v55
    %v59 = vadd.f32 %v46, 1.0
    %v60 = vadd.f32 %v58, 1.0
    %v61 = vrcp.pop %v59
    %v62 = vmul.f32 %v59, %v61
    %v63 = vsub.f32 1.0, %v62
    %v64 = vmul.f32 %v61, %v63
    %v65 = vadd.f32 %v61, %v64
    %vm66 = vweird.f32 %v59
    %vm67 = vweird.f32 %v61
    %vm68 = vmor %vm66, %vm67
    %v69 = vsel %vm68, %v61, %v65
    %v70 = vand.u32 2147483647, %v59
    %vm71 = vcmp.eq.f32.partialorder %v70, 8.507059e+37
    %v72 = vand.u32 %v59, 2147483648
    %v73 = vor.u32 1.1754944e-38, %v72
    %v74 = vsel %vm71, %v73, %v69
    %v75 = vmul.f32 %v31, %v74
    %v76 = vrcp.pop %v60
    %v77 = vmul.f32 %v60, %v76
    %v78 = vsub.f32 1.0, %v77
    %v79 = vmul.f32 %v76, %v78
    %v80 = vadd.f32 %v76, %v79
    %vm81 = vweird.f32 %v60
    %vm82 = vweird.f32 %v76
    %vm83 = vmor %vm81, %vm82
    %v84 = vsel %vm83, %v76, %v80
    %v85 = vand.u32 2147483647, %v60
    %vm86 = vcmp.eq.f32.partialorder %v85, 8.507059e+37
    %v87 = vand.u32 %v60, 2147483648
    %v88 = vor.u32 1.1754944e-38, %v87
    %v89 = vsel %vm86, %v88, %v84
    %v90 = vmul.f32 %v32, %v89
    %v91 = vadd.f32 %v29, %v75
    %v92 = vadd.f32 %v30, %v90
    %v93 = vadd.f32 %v91, 1.0
    %v94 = vlog2.pop %v93
    %v95 = vmul.f32 %v94, 0.6931472
    %v96 = vmul.f32 -0.5, %v91
    %v97 = vadd.f32 %v96, 1.0
    %v98 = vmul.f32 %v97, %v91
    %v99 = vand.u32 2147483647, %v91
    %vm100 = vcmp.lt.f32.partialorder %v99, 0.0004427343
    %v101 = vsel %vm100, %v98, %v95
    %v102 = vadd.f32 %v92, 1.0
    %v103 = vlog2.pop %v102
    %v104 = vmul.f32 %v103, 0.6931472
    %v105 = vmul.f32 -0.5, %v92
    %v106 = vadd.f32 %v105, 1.0
    %v107 = vmul.f32 %v106, %v92
    %v108 = vand.u32 2147483647, %v92
    %vm109 = vcmp.lt.f32.partialorder %v108, 0.0004427343
    %v110 = vsel %vm109, %v107, %v104
    %v111 = vlog2.pop %v27
    %v112 = vmul.f32 %v111, 0.6931472
    %v113 = vlog2.pop %v28
    %v114 = vmul.f32 %v113, 0.6931472
    %v115 = vadd.f32 %v112, 0.6931472
    %v116 = vadd.f32 %v114, 0.6931472
    %vm117 = vcmp.gt.f32.partialorder %v27, 1e+18
    %vm118 = vcmp.gt.f32.partialorder %v28, 1e+18
    %v119 = vsel %vm117, %v115, %v101
    %v120 = vsel %vm118, %v116, %v110
    %v123 = vshrl.u32 %v25, 31
    %v124 = vshrl.u32 %v26, 31
    %v125 = vshll.u32 %v123, 31
    %v126 = vshll.u32 %v124, 31
    %v129 = vor.u32 %v119, %v125
    %v130 = vor.u32 %v120, %v126
    %133 = vst [vmem:[#allocation5] sm:$0xff] %v129
    %134 = vst [vmem:[#allocation5 + $0x8] sm:$0xff] %v130
    // Predicated region
    $region10: #{tpu_custom_call.1} parent=1 // pred_check
      _
    $region11: #{tpu_custom_call.1} parent=1 // pred_check_branch
      %136 = sbr.rel (0) target = $region13
    $region12: #{tpu_custom_call.1} parent=1 // pred_region
      %138 = vsyncadd [#allocation4], 0
      %s139 = sshll.u32 [#allocation5], 4
      %s140 = int_to_ptr.vmem [resolvable:$true] %s139
      %s141 = sshll.u32 %s1, 4
      %s142 = int_to_ptr.hbm [resolvable:$true] %s141
      %147 = dma.vmem_to_hbm [thread:$0]  %s140, 256, %s142, [#allocation4], 128, 128, 8
    $region13: #{tpu_custom_call.1} parent=1 // pred_fallthru
      _
    // Predicated region
    $region14: #{tpu_custom_call.1} parent=1 // pred_check
      _
    $region15: #{tpu_custom_call.1} parent=1 // pred_check_branch
      %149 = sbr.rel (0) target = $region17
    $region16: #{tpu_custom_call.1} parent=1 // pred_region
      %151 = dma.done [#allocation4], 256
    $region17: #{tpu_custom_call.1} parent=1 // pred_fallthru
      _
    %152 = vsyncpa [#allocation3], 1
    %153 = vsyncpa [#allocation4], 1

</llo_original>
